<compile_context>
chip_gen: v6e
topology: v6e:2x2x1
jax: 0.10.0
libtpu: 0.0.40
codegen_flags: <defaults>
</compile_context>

<pallas_src>
import jax
import jax.numpy as jnp
from jax import lax
from jax.experimental import pallas as pl
from jax.experimental.pallas import tpu as pltpu

EPS = 1e-5


def _round_up(n, m):
    return -(-n // m) * m


def layer_norm_kernel(x_ref, y_ref, gamma_ref, beta_ref, o_ref):
    """Fused residual add + LayerNorm over the last axis, f32 accumulation."""
    s = x_ref[...].astype(jnp.float32) + y_ref[...].astype(jnp.float32)
    d = s.shape[-1]
    inv_d = jnp.float32(1.0 / d)

    # Two-pass statistics (PyTorch semantics: biased variance, eps inside sqrt).
    mean = jnp.sum(s, axis=-1, keepdims=True) * inv_d
    c = s - mean
    var = jnp.sum(c * c, axis=-1, keepdims=True) * inv_d
    inv = lax.rsqrt(var + EPS)

    gamma = gamma_ref[...].astype(jnp.float32)   # (1, D)
    beta = beta_ref[...].astype(jnp.float32)     # (1, D)
    # (c * inv) is a cheap sublane-broadcast scale of an existing tile; avoids
    # materializing a separate (tr, D) f32 `inv * gamma` temporary.
    o_ref[...] = ((c * inv) * gamma + beta).astype(o_ref.dtype)


def _tpu_topology():
    """(vmem_capacity_bytes, tensorcores_per_chip) with device-kind fallback."""
    kind = ""
    try:
        kind = jax.devices()[0].device_kind.lower()
    except Exception:
        pass
    num_cores = 2 if "v7" in kind else 1
    try:
        vmem_cap = int(pltpu.get_tpu_info().vmem_capacity_bytes)
    except Exception:
        if "v5" in kind or "v6" in kind:
            vmem_cap = 128 << 20
        else:
            vmem_cap = 64 << 20  # conservative (v7x has 64 MiB per TensorCore)
    return vmem_cap, num_cores


def _per_row_vmem_bytes(d, in_bytes):
    # Double-buffered x / y / out tiles plus the two in-kernel f32 full-tile
    # temporaries (s and its centered copy c).
    return d * (2 * 3 * in_bytes + 2 * 4)


def _pick_tile_rows(rows, d, in_dtype):
    """Largest row tile fitting a chip-aware VMEM budget, sublane-aligned."""
    in_bytes = jnp.dtype(in_dtype).itemsize
    # Sublane packing: 8 rows/vreg for 32-bit dtypes, 16 for 16-bit (bf16).
    row_align = 8 if in_bytes >= 4 else 16

    vmem_cap, num_cores = _tpu_topology()
    if vmem_cap > (96 << 20):
        budget = min(vmem_cap - (32 << 20), 96 << 20)   # 128-MiB chips: ~96 MiB
    else:
        budget = vmem_cap // 2                          # v7x: ~32 MiB

    per_row = _per_row_vmem_bytes(d, in_bytes)
    tr = max(1, budget // per_row)
    tr = min(tr, 1024, rows)  # past ~1K rows/step the per-step overhead is noise

    # Keep the software pipeline fed: aim for >= 4 grid steps per TensorCore
    # (>= 8 total on v7x), but never shrink the tile below ~256 rows.
    target_steps = 4 * num_cores
    tr_for_steps = _round_up(pl.cdiv(rows, target_steps), row_align)
    tr = min(tr, max(tr_for_steps, 256))

    if rows <= row_align:
        tr = rows  # full extent along the row dim is always a legal block shape
    else:
        tr = max(row_align, (tr // row_align) * row_align)
    return int(tr), vmem_cap, in_bytes


def layer_norm(x, sublayer_output, gamma, beta):
    """x, sublayer_output: (..., D). gamma, beta: (D,). Returns same shape as x."""
    orig_shape = x.shape
    D = orig_shape[-1]
    rows = 1
    for dim in orig_shape[:-1]:
        rows *= dim

    x2 = x.reshape(rows, D)
    y2 = sublayer_output.reshape(rows, D)
    g2 = gamma.reshape(1, D)
    b2 = beta.reshape(1, D)

    tr, vmem_cap, in_bytes = _pick_tile_rows(rows, D, x.dtype)
    grid = (pl.cdiv(rows, tr),)  # ragged row tail handled by Pallas block masking

    # VMEM limit consistent with the tiling model (double-buffered I/O + f32 temps).
    needed = tr * _per_row_vmem_bytes(D, in_bytes) + (4 << 20)
    vmem_limit = int(min(max(needed, 32 << 20), vmem_cap - (8 << 20)))

    # NOTE: block last dim == full array dim D, so no padding even if D % 128 != 0.
    # TODO(synk): consider pipeline_mode=pl.Buffered(3) on the x/y specs for v7x
    # if profiling shows exposed DMA at step boundaries.
    out = pl.pallas_call(
        layer_norm_kernel,
        out_shape=jax.ShapeDtypeStruct((rows, D), x.dtype),
        grid_spec=pltpu.PrefetchScalarGridSpec(
            num_scalar_prefetch=0,
            grid=grid,
            in_specs=[
                pl.BlockSpec((tr, D), lambda i: (i, 0)),  # x tile
                pl.BlockSpec((tr, D), lambda i: (i, 0)),  # sublayer tile
                pl.BlockSpec((1, D), lambda i: (0, 0)),   # gamma (VMEM-resident)
                pl.BlockSpec((1, D), lambda i: (0, 0)),   # beta  (VMEM-resident)
            ],
            out_specs=pl.BlockSpec((tr, D), lambda i: (i, 0)),
        ),
        compiler_params=pltpu.CompilerParams(
            dimension_semantics=("parallel",),
            vmem_limit_bytes=vmem_limit,
        ),
    )(x2, y2, g2, b2)

    return out.reshape(orig_shape)


if __name__ == "__main__":
    batch, seq, hidden = 2, 8, 32

    key = jax.random.PRNGKey(0)
    kx, ky = jax.random.split(key)
    x = jax.random.normal(kx, (batch, seq, hidden), dtype=jnp.float32)
    sub = jax.random.normal(ky, (batch, seq, hidden), dtype=jnp.float32)

    # nn.LayerNorm defaults: weight=1, bias=0.
    gamma = jnp.ones((hidden,), dtype=jnp.float32)
    beta = jnp.zeros((hidden,), dtype=jnp.float32)

    out = layer_norm(x, sub, gamma, beta)
    jax.block_until_ready(out)

    # Reference check in plain JAX (two-pass variance, PyTorch semantics).
    s = x + sub
    mean = jnp.mean(s, axis=-1, keepdims=True)
    var = jnp.mean((s - mean) ** 2, axis=-1, keepdims=True)
    ref = (s - mean) / jnp.sqrt(var + EPS) * gamma + beta
    err = float(jnp.max(jnp.abs(out - ref)))
    assert jnp.allclose(out, ref, atol=1e-4, rtol=1e-4), f"max abs err = {err}"

    print("KERNEL_OK")
</pallas_src>

<mosaic_0001>
module attributes {stable_mosaic.version = 11 : i64} {
  func.func @layer_norm_kernel(%arg0: i32, %arg1: memref<16x32xf32, #tpu.memory_space<vmem>>, %arg2: memref<16x32xf32, #tpu.memory_space<vmem>>, %arg3: memref<1x32xf32, #tpu.memory_space<vmem>>, %arg4: memref<1x32xf32, #tpu.memory_space<vmem>>, %arg5: memref<16x32xf32, #tpu.memory_space<vmem>>) attributes {dimension_semantics = [#tpu.dimension_semantics<parallel>], iteration_bounds = array<i64: 1>, scalar_prefetch = 0 : i64, scratch_operands = 0 : i64, tpu.core_type = #tpu.core_type<tc>, window_params = [{transform_indices = @transform_0, window_bounds = array<i64: 16, 32>}, {transform_indices = @transform_1, window_bounds = array<i64: 16, 32>}, {pipeline_mode = #tpu.pipeline_mode<synchronous>, transform_indices = @transform_2, window_bounds = array<i64: 1, 32>}, {pipeline_mode = #tpu.pipeline_mode<synchronous>, transform_indices = @transform_3, window_bounds = array<i64: 1, 32>}, {transform_indices = @transform_4, window_bounds = array<i64: 16, 32>}]} {
    %c0 = arith.constant 0 : index
    %c0_0 = arith.constant 0 : index
    %0 = vector.load %arg1[%c0, %c0_0] : memref<16x32xf32, #tpu.memory_space<vmem>>, vector<16x32xf32>
    %c0_1 = arith.constant 0 : index
    %c0_2 = arith.constant 0 : index
    %1 = vector.load %arg2[%c0_1, %c0_2] : memref<16x32xf32, #tpu.memory_space<vmem>>, vector<16x32xf32>
    %2 = arith.addf %0, %1 : vector<16x32xf32>
    %cst = arith.constant dense<0.000000e+00> : vector<16xf32>
    %3 = vector.multi_reduction <add>, %2, %cst [1] : vector<16x32xf32> to vector<16xf32>
    %4 = vector.shape_cast %3 : vector<16xf32> to vector<16x1xf32>
    %cst_3 = arith.constant 3.125000e-02 : f32
    %5 = vector.broadcast %cst_3 : f32 to vector<16x1xf32>
    %6 = arith.mulf %4, %5 : vector<16x1xf32>
    %7 = vector.broadcast %6 : vector<16x1xf32> to vector<16x32xf32>
    %8 = arith.subf %2, %7 : vector<16x32xf32>
    %9 = arith.mulf %8, %8 : vector<16x32xf32>
    %cst_4 = arith.constant dense<0.000000e+00> : vector<16xf32>
    %10 = vector.multi_reduction <add>, %9, %cst_4 [1] : vector<16x32xf32> to vector<16xf32>
    %11 = vector.shape_cast %10 : vector<16xf32> to vector<16x1xf32>
    %cst_5 = arith.constant 3.125000e-02 : f32
    %12 = vector.broadcast %cst_5 : f32 to vector<16x1xf32>
    %13 = arith.mulf %11, %12 : vector<16x1xf32>
    %cst_6 = arith.constant 9.99999974E-6 : f32
    %14 = vector.broadcast %cst_6 : f32 to vector<16x1xf32>
    %15 = arith.addf %13, %14 : vector<16x1xf32>
    %16 = math.rsqrt %15 : vector<16x1xf32>
    %c0_7 = arith.constant 0 : index
    %c0_8 = arith.constant 0 : index
    %17 = vector.load %arg3[%c0_7, %c0_8] : memref<1x32xf32, #tpu.memory_space<vmem>>, vector<1x32xf32>
    %c0_9 = arith.constant 0 : index
    %c0_10 = arith.constant 0 : index
    %18 = vector.load %arg4[%c0_9, %c0_10] : memref<1x32xf32, #tpu.memory_space<vmem>>, vector<1x32xf32>
    %19 = vector.broadcast %16 : vector<16x1xf32> to vector<16x32xf32>
    %20 = arith.mulf %8, %19 : vector<16x32xf32>
    %21 = vector.broadcast %17 : vector<1x32xf32> to vector<16x32xf32>
    %22 = arith.mulf %20, %21 : vector<16x32xf32>
    %23 = vector.broadcast %18 : vector<1x32xf32> to vector<16x32xf32>
    %24 = arith.addf %22, %23 : vector<16x32xf32>
    %c0_11 = arith.constant 0 : index
    %c0_12 = arith.constant 0 : index
    %25 = vector.load %arg5[%c0_11, %c0_12] : memref<16x32xf32, #tpu.memory_space<vmem>>, vector<16x32xf32>
    tpu.vector_store %arg5[%c0_11, %c0_12], %24 {strides = array<i32>} : memref<16x32xf32, #tpu.memory_space<vmem>>, vector<16x32xf32>,
    return
  }
  func.func @transform_0(%arg0: i32) -> (i32, i32) {
    %c0_i32 = arith.constant 0 : i32
    %c0_i32_0 = arith.constant 0 : i32
    return %arg0, %c0_i32 : i32, i32
  }
  func.func @transform_1(%arg0: i32) -> (i32, i32) {
    %c0_i32 = arith.constant 0 : i32
    %c0_i32_0 = arith.constant 0 : i32
    return %arg0, %c0_i32 : i32, i32
  }
  func.func @transform_2(%arg0: i32) -> (i32, i32) {
    %c0_i32 = arith.constant 0 : i32
    %c0_i32_0 = arith.constant 0 : i32
    %c0_i32_1 = arith.constant 0 : i32
    return %c0_i32, %c0_i32_0 : i32, i32
  }
  func.func @transform_3(%arg0: i32) -> (i32, i32) {
    %c0_i32 = arith.constant 0 : i32
    %c0_i32_0 = arith.constant 0 : i32
    %c0_i32_1 = arith.constant 0 : i32
    return %c0_i32, %c0_i32_0 : i32, i32
  }
  func.func @transform_4(%arg0: i32) -> (i32, i32) {
    %c0_i32 = arith.constant 0 : i32
    %c0_i32_0 = arith.constant 0 : i32
    return %arg0, %c0_i32 : i32, i32
  }
}

</mosaic_0001>

<llo_original>
// kernel: tpu_custom_call.1
$region0: #{tpu_custom_call.1}
  #allocation0 [shape = 'u32[]', space=smem, size = 0x4, offset = 0x4, fixed_abs, tag = 'smem constant byte address 0x4 - core index']
  #allocation1 [shape = 'u32[144,128]{1,0:T(1,128)}', space=vmem, size = 0x12000, scoped, tag = 'internal scratch']
  %s0 = inlined_call_operand.hbm [shape: f32[16,32], index: 0, kind: input, shape index: {}]
  %s1 = inlined_call_operand.hbm [shape: f32[16,32], index: 1, kind: input, shape index: {}]
  %s2 = inlined_call_operand.vmem [shape: f32[1,32], index: 2, kind: input, shape index: {}]
  %s3 = inlined_call_operand.vmem [shape: f32[1,32], index: 3, kind: input, shape index: {}]
  %s4 = inlined_call_operand.hbm [shape: f32[16,32], index: 4, kind: output, shape index: {}]
  %s5 = sld [smem:[#allocation0]]
  $region34: #{tpu_custom_call.1} parent=0
    _
  %s7 = ssub.s32 1, %s5
  %s8 = scalar_select 0, %s7, %s5
  $region1: #{tpu_custom_call.1} parent=0
    #allocation2 [shape = 'u8[8192]{0}', space=vmem, size = 0x2000, scoped, tag = 'input window, operand 0, single buffered']
    #allocation3 [shape = 's32[1]{0}', space=sflag, size = 0x4, scoped, tag = 'scoped memory for tpu_custom_call.1']
    #allocation4 [shape = 's32[1]{0}', space=sflag, size = 0x4, scoped, tag = 'scoped memory for tpu_custom_call.1']
    #allocation5 [shape = 'u8[8192]{0}', space=vmem, size = 0x2000, scoped, tag = 'input window, operand 1, single buffered']
    #allocation6 [shape = 's32[1]{0}', space=sflag, size = 0x4, scoped, tag = 'scoped memory for tpu_custom_call.1']
    #allocation7 [shape = 'u8[8192]{0}', space=vmem, size = 0x2000, scoped, tag = 'output window, operand 0, single buffered']
    %9 = vsyncpa [#allocation3], 0
    %10 = vsyncpa [#allocation6], 0
    %11 = vsyncpa [#allocation4], 0
    // Predicated region
    $region2: #{tpu_custom_call.1} parent=1 // pred_check
      _
    $region3: #{tpu_custom_call.1} parent=1 // pred_check_branch
      %13 = sbr.rel (0) target = $region5
    $region4: #{tpu_custom_call.1} parent=1 // pred_region
      %s15 = ssub.s32 256, 256
      %16 = vsyncadd [#allocation3], %s15
      %s17 = sshll.u32 [#allocation2], 4
      %s18 = int_to_ptr.vmem [resolvable:$true] %s17
      %23 = dma.hbm_to_vmem [thread:$0]  %s0, 256, %s18, [#allocation3], 128, 128, 8
    $region5: #{tpu_custom_call.1} parent=1 // pred_fallthru
      _
    // Predicated region
    $region6: #{tpu_custom_call.1} parent=1 // pred_check
      _
    $region7: #{tpu_custom_call.1} parent=1 // pred_check_branch
      %25 = sbr.rel (0) target = $region9
    $region8: #{tpu_custom_call.1} parent=1 // pred_region
      %s27 = ssub.s32 256, 256
      %28 = vsyncadd [#allocation6], %s27
      %s29 = sshll.u32 [#allocation5], 4
      %s30 = int_to_ptr.vmem [resolvable:$true] %s29
      %35 = dma.hbm_to_vmem [thread:$0]  %s1, 256, %s30, [#allocation6], 128, 128, 8
    $region9: #{tpu_custom_call.1} parent=1 // pred_fallthru
      _
    // Predicated region
    $region10: #{tpu_custom_call.1} parent=1 // pred_check
      _
    $region11: #{tpu_custom_call.1} parent=1 // pred_check_branch
      %37 = sbr.rel (0) target = $region13
    $region12: #{tpu_custom_call.1} parent=1 // pred_region
      _
    $region13: #{tpu_custom_call.1} parent=1 // pred_fallthru
      _
    // Predicated region
    $region14: #{tpu_custom_call.1} parent=1 // pred_check
      _
    $region15: #{tpu_custom_call.1} parent=1 // pred_check_branch
      %39 = sbr.rel (0) target = $region17
    $region16: #{tpu_custom_call.1} parent=1 // pred_region
      _
    $region17: #{tpu_custom_call.1} parent=1 // pred_fallthru
      _
    // Predicated region
    $region18: #{tpu_custom_call.1} parent=1 // pred_check
      _
    $region19: #{tpu_custom_call.1} parent=1 // pred_check_branch
      %41 = sbr.rel (0) target = $region21
    $region20: #{tpu_custom_call.1} parent=1 // pred_region
      %42 = dma.done [#allocation3], 256
    $region21: #{tpu_custom_call.1} parent=1 // pred_fallthru
      _
    // Predicated region
    $region22: #{tpu_custom_call.1} parent=1 // pred_check
      _
    $region23: #{tpu_custom_call.1} parent=1 // pred_check_branch
      %44 = sbr.rel (0) target = $region25
    $region24: #{tpu_custom_call.1} parent=1 // pred_region
      %45 = dma.done [#allocation6], 256
    $region25: #{tpu_custom_call.1} parent=1 // pred_fallthru
      _
    %v46 = vld [vmem:[#allocation2] sm:$0xff]
    %v47 = vld [vmem:[#allocation2 + $0x8] sm:$0xff]
    %v48 = vld [vmem:[#allocation5] sm:$0xff]
    %v49 = vld [vmem:[#allocation5 + $0x8] sm:$0xff]
    %v50 = vadd.f32 %v46, %v48
    %v51 = vadd.f32 %v47, %v49
    %vm52 = vcmask 261120
    %v53 = vsel %vm52, %v50, 0.0
    %54 = vadd.xlane.f32.xlu0 %v53
    %v55 = vpop.xlane.xlu0 %54
    %v56 = vsel %vm52, %v51, 0.0
    %57 = vadd.xlane.f32.xlu0 %v56
    %v58 = vpop.xlane.xlu0 %57
    %v59 = vmul.f32 %v55, 0.03125
    %v60 = vmul.f32 %v58, 0.03125
    %v61 = vsub.f32 %v50, %v59
    %v62 = vsub.f32 %v51, %v60
    %v63 = vmul.f32 %v61, %v61
    %v64 = vmul.f32 %v62, %v62
    %v65 = vsel %vm52, %v63, 0.0
    %66 = vadd.xlane.f32.xlu0 %v65
    %v67 = vpop.xlane.xlu0 %66
    %v68 = vsel %vm52, %v64, 0.0
    %69 = vadd.xlane.f32.xlu0 %v68
    %v70 = vpop.xlane.xlu0 %69
    %v71 = vmul.f32 %v67, 0.03125
    %v72 = vmul.f32 %v70, 0.03125
    %v73 = vadd.f32 %v71, 1e-05
    %v74 = vadd.f32 %v72, 1e-05
    %v75 = vrsqrt.pop %v73
    %v76 = vrsqrt.pop %v74
    %v77 = vld [vmem:[%s2] sm:$0x1]
    %v78 = vld [vmem:[%s3] sm:$0x1]
    %v79 = vmul.f32 %v61, %v75
    %v80 = vmul.f32 %v62, %v76
    %v82 = vlaneseq
    %v83 = vshrl.u32 %v82, 7
    %v84 = vsub.s32 0, %v83
    %v85 = vrot.slane %v77, %v84
    %v87 = vmul.f32 %v79, %v85
    %v88 = vmul.f32 %v80, %v85
    %v90 = vlaneseq
    %v91 = vshrl.u32 %v90, 7
    %v92 = vsub.s32 0, %v91
    %v93 = vrot.slane %v78, %v92
    %v95 = vadd.f32 %v87, %v93
    %v96 = vadd.f32 %v88, %v93
    %97 = vst.msk [vmem:[#allocation7] sm:$0xff] %vm52, %v95
    %98 = vst.msk [vmem:[#allocation7 + $0x8] sm:$0xff] %vm52, %v96
    // Predicated region
    $region26: #{tpu_custom_call.1} parent=1 // pred_check
      _
    $region27: #{tpu_custom_call.1} parent=1 // pred_check_branch
      %100 = sbr.rel (0) target = $region29
    $region28: #{tpu_custom_call.1} parent=1 // pred_region
      %s102 = ssub.s32 256, 256
      %103 = vsyncadd [#allocation4], %s102
      %s104 = sshll.u32 [#allocation7], 4
      %s105 = int_to_ptr.vmem [resolvable:$true] %s104
      %110 = dma.vmem_to_hbm [thread:$0]  %s105, 256, %s4, [#allocation4], 128, 128, 8
    $region29: #{tpu_custom_call.1} parent=1 // pred_fallthru
      _
    // Predicated region
    $region30: #{tpu_custom_call.1} parent=1 // pred_check
      _
    $region31: #{tpu_custom_call.1} parent=1 // pred_check_branch
      %112 = sbr.rel (0) target = $region33
    $region32: #{tpu_custom_call.1} parent=1 // pred_region
      %113 = dma.done [#allocation4], 256
    $region33: #{tpu_custom_call.1} parent=1 // pred_fallthru
      _
    %114 = vsyncpa [#allocation3], 1
    %115 = vsyncpa [#allocation6], 1
    %116 = vsyncpa [#allocation4], 1

</llo_original>
